<compile_context>
chip_gen: v7x
topology: tpu7x:2x2x1
jax: 0.10.0
libtpu: 0.0.40
codegen_flags: <defaults>
</compile_context>

<pallas_src>
import functools

import jax
import jax.numpy as jnp
from jax.experimental import pallas as pl
from jax.experimental.pallas import tpu as pltpu


def _round_up(x, m):
    return (x + m - 1) // m * m


# ----------------------------- Pallas kernel ------------------------------- #

def _fused_sage_kernel(a_ref, x_ref, ws1_ref, wn1_ref, b1_ref,
                       ws2_ref, wn2_ref, b2_ref, wfc_ref, bfc_ref,
                       o_ref, h1_ref, *, tm):
    """Two-phase fused SAGE forward.

    phase 0: layer 1 (mean agg + self/neigh proj + bias + relu) -> h1 scratch
    phase 1: layer 2 (+ bias) immediately followed by the final fc -> output
    """
    phase = pl.program_id(0)
    i = pl.program_id(1)
    row0 = pl.multiple_of(i * tm, tm)

    @pl.when(phase == 0)
    def _():
        # mean aggregation over neighbors (A is pre-row-normalized), f32 acc on MXU
        agg = jnp.dot(a_ref[...], x_ref[...], preferred_element_type=jnp.float32)
        x_tile = x_ref[pl.ds(row0, tm), :]
        h = (jnp.dot(x_tile, ws1_ref[...], preferred_element_type=jnp.float32)
             + jnp.dot(agg.astype(jnp.bfloat16), wn1_ref[...],
                       preferred_element_type=jnp.float32)
             + b1_ref[...])
        h = jnp.maximum(h, 0.0)
        # TODO(synk): training-mode dropout (random mask) not implemented; eval identity.
        h1_ref[pl.ds(row0, tm), :] = h.astype(jnp.bfloat16)
        # keep the (later overwritten) output buffer deterministic in phase 0
        o_ref[...] = jnp.zeros_like(o_ref)

    @pl.when(phase == 1)
    def _():
        agg2 = jnp.dot(a_ref[...], h1_ref[...], preferred_element_type=jnp.float32)
        h1_tile = h1_ref[pl.ds(row0, tm), :]
        h2 = (jnp.dot(h1_tile, ws2_ref[...], preferred_element_type=jnp.float32)
              + jnp.dot(agg2.astype(jnp.bfloat16), wn2_ref[...],
                        preferred_element_type=jnp.float32)
              + b2_ref[...])
        # fc folded in: trivially small FLOPs, pure MXU filler under the pipeline
        out = jnp.dot(h2, wfc_ref[...], preferred_element_type=jnp.float32) + bfc_ref[...]
        o_ref[...] = out.astype(o_ref.dtype)


# ------------------------------ Wrapper ------------------------------------ #

def sage_forward(a_norm, x, params):
    n, nfeat = x.shape
    nhid = params["gc1_w_self"].shape[1]
    nclass = params["fc_w"].shape[1]

    # Lane (last-dim) padding to 128 -> dense unmasked stores / full MXU tiles.
    f_pad = _round_up(nfeat, 128)
    h_pad = _round_up(nhid, 128)
    c_pad = _round_up(nclass, 128)
    # Node (sublane) padding; TM multiple of 16 (bf16 sublane packing).
    n16 = _round_up(n, 16)
    tm = 256 if n16 >= 256 else n16
    n_pad = _round_up(n, tm)
    n_tiles = n_pad // tm

    def pad2(arr, rows, cols, dtype):
        return jnp.pad(arr.astype(dtype),
                       ((0, rows - arr.shape[0]), (0, cols - arr.shape[1])))

    a_p = pad2(a_norm, n_pad, n_pad, jnp.bfloat16)
    x_p = pad2(x, n_pad, f_pad, jnp.bfloat16)
    ws1 = pad2(params["gc1_w_self"], f_pad, h_pad, jnp.bfloat16)
    wn1 = pad2(params["gc1_w_neigh"], f_pad, h_pad, jnp.bfloat16)
    b1 = pad2(params["gc1_b"], 1, h_pad, jnp.float32)
    ws2 = pad2(params["gc2_w_self"], h_pad, h_pad, jnp.bfloat16)
    wn2 = pad2(params["gc2_w_neigh"], h_pad, h_pad, jnp.bfloat16)
    b2 = pad2(params["gc2_b"], 1, h_pad, jnp.float32)
    wfc = pad2(params["fc_w"], h_pad, c_pad, jnp.float32)
    bfc = pad2(params["fc_b"], 1, c_pad, jnp.float32)

    kernel = functools.partial(_fused_sage_kernel, tm=tm)
    full_block = lambda p, i: (0, 0)

    out_p = pl.pallas_call(
        kernel,
        out_shape=jax.ShapeDtypeStruct((n_pad, c_pad), jnp.float32),
        grid_spec=pltpu.PrefetchScalarGridSpec(
            num_scalar_prefetch=0,
            grid=(2, n_tiles),  # (phase, row tile)
            in_specs=[
                pl.BlockSpec((tm, n_pad), lambda p, i: (i, 0)),   # A row slab (streamed)
                pl.BlockSpec((n_pad, f_pad), full_block),         # X (resident)
                pl.BlockSpec((f_pad, h_pad), full_block),         # W_self1
                pl.BlockSpec((f_pad, h_pad), full_block),         # W_neigh1
                pl.BlockSpec((1, h_pad), full_block),             # b1
                pl.BlockSpec((h_pad, h_pad), full_block),         # W_self2
                pl.BlockSpec((h_pad, h_pad), full_block),         # W_neigh2
                pl.BlockSpec((1, h_pad), full_block),             # b2
                pl.BlockSpec((h_pad, c_pad), full_block),         # W_fc
                pl.BlockSpec((1, c_pad), full_block),             # b_fc
            ],
            out_specs=pl.BlockSpec((tm, c_pad), lambda p, i: (i, 0)),
            scratch_shapes=[pltpu.VMEM((n_pad, h_pad), jnp.bfloat16)],  # h1
        ),
        compiler_params=pltpu.CompilerParams(
            # Row axis must be sequential: phase-1 tiles read the full h1
            # scratch written by ALL phase-0 tiles (cross-tile dependency).
            dimension_semantics=("arbitrary", "arbitrary"),
            vmem_limit_bytes=48 * 1024 * 1024,
        ),
    )(a_p, x_p, ws1, wn1, b1, ws2, wn2, b2, wfc, bfc)

    return out_p[:n, :nclass]


# --------------------------- Parameter / input setup ------------------------ #

def init_params(key, nfeat, nhid, nclass):
    keys = jax.random.split(key, 7)
    scale = 0.1
    return {
        "gc1_w_self":  scale * jax.random.normal(keys[0], (nfeat, nhid), jnp.float32),
        "gc1_w_neigh": scale * jax.random.normal(keys[1], (nfeat, nhid), jnp.float32),
        "gc1_b":       jnp.zeros((1, nhid), jnp.float32),
        "gc2_w_self":  scale * jax.random.normal(keys[2], (nhid, nhid), jnp.float32),
        "gc2_w_neigh": scale * jax.random.normal(keys[3], (nhid, nhid), jnp.float32),
        "gc2_b":       jnp.zeros((1, nhid), jnp.float32),
        "fc_w":        scale * jax.random.normal(keys[4], (nhid, nclass), jnp.float32),
        "fc_b":        scale * jax.random.normal(keys[5], (1, nclass), jnp.float32),
    }


def build_graph(key, n):
    """Deterministic random graph as row-normalized dense adjacency (mean agg)."""
    a = (jax.random.uniform(key, (n, n)) < 0.3).astype(jnp.float32)
    a = a + jnp.eye(n, dtype=jnp.float32)          # self-loops, avoid 0-degree
    a = jnp.minimum(a, 1.0)
    deg = jnp.maximum(a.sum(axis=1, keepdims=True), 1.0)
    return a / deg


if __name__ == "__main__":
    N, NFEAT, NHID, NCLASS = 16, 16, 32, 4

    key = jax.random.PRNGKey(0)
    k_graph, k_x, k_params = jax.random.split(key, 3)

    a_norm = build_graph(k_graph, N)
    x = jax.random.normal(k_x, (N, NFEAT), jnp.float32)
    params = init_params(k_params, NFEAT, NHID, NCLASS)

    out = jax.jit(sage_forward)(a_norm, x, params)
    jax.block_until_ready(out)

    # pure-JAX f32 reference for a loose (bf16-tolerance) correctness check
    def ref_forward(a, xx, p):
        h = jax.nn.relu(xx @ p["gc1_w_self"] + (a @ xx) @ p["gc1_w_neigh"] + p["gc1_b"])
        h = h @ p["gc2_w_self"] + (a @ h) @ p["gc2_w_neigh"] + p["gc2_b"]
        return h @ p["fc_w"] + p["fc_b"]

    ref = ref_forward(a_norm, x, params)

    assert out.shape == (N, NCLASS)
    assert jnp.all(jnp.isfinite(out))
    max_err = float(jnp.max(jnp.abs(out - ref)))
    assert max_err < 5e-2, f"max abs err {max_err}"
    print("KERNEL_OK")
</pallas_src>

<mosaic_0001>
module attributes {stable_mosaic.version = 11 : i64} {
  func.func @_fused_sage_kernel(%arg0: i32, %arg1: i32, %arg2: memref<16x16xbf16, #tpu.memory_space<vmem>>, %arg3: memref<16x128xbf16, #tpu.memory_space<vmem>>, %arg4: memref<128x128xbf16, #tpu.memory_space<vmem>>, %arg5: memref<128x128xbf16, #tpu.memory_space<vmem>>, %arg6: memref<1x128xf32, #tpu.memory_space<vmem>>, %arg7: memref<128x128xbf16, #tpu.memory_space<vmem>>, %arg8: memref<128x128xbf16, #tpu.memory_space<vmem>>, %arg9: memref<1x128xf32, #tpu.memory_space<vmem>>, %arg10: memref<128x128xf32, #tpu.memory_space<vmem>>, %arg11: memref<1x128xf32, #tpu.memory_space<vmem>>, %arg12: memref<16x128xf32, #tpu.memory_space<vmem>>, %arg13: memref<16x128xbf16, #tpu.memory_space<vmem>>) attributes {dimension_semantics = [#tpu.dimension_semantics<arbitrary>, #tpu.dimension_semantics<arbitrary>], iteration_bounds = array<i64: 2, 1>, scalar_prefetch = 0 : i64, scratch_operands = 1 : i64, tpu.core_type = #tpu.core_type<tc>, window_params = [{transform_indices = @transform_0, window_bounds = array<i64: 16, 16>}, {pipeline_mode = #tpu.pipeline_mode<synchronous>, transform_indices = @transform_1, window_bounds = array<i64: 16, 128>}, {pipeline_mode = #tpu.pipeline_mode<synchronous>, transform_indices = @transform_2, window_bounds = array<i64: 128, 128>}, {pipeline_mode = #tpu.pipeline_mode<synchronous>, transform_indices = @transform_3, window_bounds = array<i64: 128, 128>}, {pipeline_mode = #tpu.pipeline_mode<synchronous>, transform_indices = @transform_4, window_bounds = array<i64: 1, 128>}, {pipeline_mode = #tpu.pipeline_mode<synchronous>, transform_indices = @transform_5, window_bounds = array<i64: 128, 128>}, {pipeline_mode = #tpu.pipeline_mode<synchronous>, transform_indices = @transform_6, window_bounds = array<i64: 128, 128>}, {pipeline_mode = #tpu.pipeline_mode<synchronous>, transform_indices = @transform_7, window_bounds = array<i64: 1, 128>}, {pipeline_mode = #tpu.pipeline_mode<synchronous>, transform_indices = @transform_8, window_bounds = array<i64: 128, 128>}, {pipeline_mode = #tpu.pipeline_mode<synchronous>, transform_indices = @transform_9, window_bounds = array<i64: 1, 128>}, {transform_indices = @transform_10, window_bounds = array<i64: 16, 128>}]} {
    %c16_i32 = arith.constant 16 : i32
    %0 = arith.muli %arg1, %c16_i32 : i32
    %1 = tpu.assume_multiple %0, 16 : i32
    %c0_i32 = arith.constant 0 : i32
    %2 = arith.cmpi eq, %arg0, %c0_i32 : i32
    %3 = arith.extui %2 : i1 to i32
    %c0_i32_0 = arith.constant 0 : i32
    %4 = arith.cmpi ne, %3, %c0_i32_0 : i32
    scf.if %4 {
      %c0 = arith.constant 0 : index
      %c0_2 = arith.constant 0 : index
      %8 = vector.load %arg2[%c0, %c0_2] : memref<16x16xbf16, #tpu.memory_space<vmem>>, vector<16x16xbf16>
      %c0_3 = arith.constant 0 : index
      %c0_4 = arith.constant 0 : index
      %9 = vector.load %arg3[%c0_3, %c0_4] : memref<16x128xbf16, #tpu.memory_space<vmem>>, vector<16x128xbf16>
      %cst = arith.constant dense<0.000000e+00> : vector<16x128xf32>
      %10 = tpu.matmul %8, %9, %cst {dimension_numbers = #tpu.dot_dimension_numbers<[1], [0], [0], [1], [0, 0, 1, 1], [], []>} : vector<16x16xbf16>, vector<16x128xbf16>, vector<16x128xf32> -> vector<16x128xf32>
      %11 = arith.index_cast %1 : i32 to index
      %c0_5 = arith.constant 0 : index
      %12 = vector.load %arg3[%11, %c0_5] : memref<16x128xbf16, #tpu.memory_space<vmem>>, vector<16x128xbf16>
      %c0_6 = arith.constant 0 : index
      %c0_7 = arith.constant 0 : index
      %13 = vector.load %arg4[%c0_6, %c0_7] : memref<128x128xbf16, #tpu.memory_space<vmem>>, vector<128x128xbf16>
      %cst_8 = arith.constant dense<0.000000e+00> : vector<16x128xf32>
      %14 = tpu.matmul %12, %13, %cst_8 {dimension_numbers = #tpu.dot_dimension_numbers<[1], [0], [0], [1], [0, 0, 1, 1], [], []>} : vector<16x128xbf16>, vector<128x128xbf16>, vector<16x128xf32> -> vector<16x128xf32>
      %15 = arith.truncf %10 : vector<16x128xf32> to vector<16x128xbf16>
      %c0_9 = arith.constant 0 : index
      %c0_10 = arith.constant 0 : index
      %16 = vector.load %arg5[%c0_9, %c0_10] : memref<128x128xbf16, #tpu.memory_space<vmem>>, vector<128x128xbf16>
      %cst_11 = arith.constant dense<0.000000e+00> : vector<16x128xf32>
      %17 = tpu.matmul %15, %16, %cst_11 {dimension_numbers = #tpu.dot_dimension_numbers<[1], [0], [0], [1], [0, 0, 1, 1], [], []>} : vector<16x128xbf16>, vector<128x128xbf16>, vector<16x128xf32> -> vector<16x128xf32>
      %18 = arith.addf %14, %17 : vector<16x128xf32>
      %c0_12 = arith.constant 0 : index
      %c0_13 = arith.constant 0 : index
      %19 = vector.load %arg6[%c0_12, %c0_13] : memref<1x128xf32, #tpu.memory_space<vmem>>, vector<1x128xf32>
      %20 = vector.broadcast %19 : vector<1x128xf32> to vector<16x128xf32>
      %21 = arith.addf %18, %20 : vector<16x128xf32>
      %cst_14 = arith.constant 0.000000e+00 : f32
      %22 = vector.broadcast %cst_14 : f32 to vector<16x128xf32>
      %23 = arith.maximumf %21, %22 : vector<16x128xf32>
      %24 = arith.truncf %23 : vector<16x128xf32> to vector<16x128xbf16>
      %25 = arith.index_cast %1 : i32 to index
      %c0_15 = arith.constant 0 : index
      %26 = vector.load %arg13[%25, %c0_15] : memref<16x128xbf16, #tpu.memory_space<vmem>>, vector<16x128xbf16>
      tpu.vector_store %arg13[%25, %c0_15], %24 {strides = array<i32>} : memref<16x128xbf16, #tpu.memory_space<vmem>>, vector<16x128xbf16>,
      %cst_16 = arith.constant 0.000000e+00 : f32
      %27 = vector.broadcast %cst_16 : f32 to vector<16x128xf32>
      %c0_17 = arith.constant 0 : index
      %c0_18 = arith.constant 0 : index
      %28 = vector.load %arg12[%c0_17, %c0_18] : memref<16x128xf32, #tpu.memory_space<vmem>>, vector<16x128xf32>
      tpu.vector_store %arg12[%c0_17, %c0_18], %27 {strides = array<i32>} : memref<16x128xf32, #tpu.memory_space<vmem>>, vector<16x128xf32>,
    } else {
    }
    %c1_i32 = arith.constant 1 : i32
    %5 = arith.cmpi eq, %arg0, %c1_i32 : i32
    %6 = arith.extui %5 : i1 to i32
    %c0_i32_1 = arith.constant 0 : i32
    %7 = arith.cmpi ne, %6, %c0_i32_1 : i32
    scf.if %7 {
      %c0 = arith.constant 0 : index
      %c0_2 = arith.constant 0 : index
      %8 = vector.load %arg2[%c0, %c0_2] : memref<16x16xbf16, #tpu.memory_space<vmem>>, vector<16x16xbf16>
      %c0_3 = arith.constant 0 : index
      %c0_4 = arith.constant 0 : index
      %9 = vector.load %arg13[%c0_3, %c0_4] : memref<16x128xbf16, #tpu.memory_space<vmem>>, vector<16x128xbf16>
      %cst = arith.constant dense<0.000000e+00> : vector<16x128xf32>
      %10 = tpu.matmul %8, %9, %cst {dimension_numbers = #tpu.dot_dimension_numbers<[1], [0], [0], [1], [0, 0, 1, 1], [], []>} : vector<16x16xbf16>, vector<16x128xbf16>, vector<16x128xf32> -> vector<16x128xf32>
      %11 = arith.index_cast %1 : i32 to index
      %c0_5 = arith.constant 0 : index
      %12 = vector.load %arg13[%11, %c0_5] : memref<16x128xbf16, #tpu.memory_space<vmem>>, vector<16x128xbf16>
      %c0_6 = arith.constant 0 : index
      %c0_7 = arith.constant 0 : index
      %13 = vector.load %arg7[%c0_6, %c0_7] : memref<128x128xbf16, #tpu.memory_space<vmem>>, vector<128x128xbf16>
      %cst_8 = arith.constant dense<0.000000e+00> : vector<16x128xf32>
      %14 = tpu.matmul %12, %13, %cst_8 {dimension_numbers = #tpu.dot_dimension_numbers<[1], [0], [0], [1], [0, 0, 1, 1], [], []>} : vector<16x128xbf16>, vector<128x128xbf16>, vector<16x128xf32> -> vector<16x128xf32>
      %15 = arith.truncf %10 : vector<16x128xf32> to vector<16x128xbf16>
      %c0_9 = arith.constant 0 : index
      %c0_10 = arith.constant 0 : index
      %16 = vector.load %arg8[%c0_9, %c0_10] : memref<128x128xbf16, #tpu.memory_space<vmem>>, vector<128x128xbf16>
      %cst_11 = arith.constant dense<0.000000e+00> : vector<16x128xf32>
      %17 = tpu.matmul %15, %16, %cst_11 {dimension_numbers = #tpu.dot_dimension_numbers<[1], [0], [0], [1], [0, 0, 1, 1], [], []>} : vector<16x128xbf16>, vector<128x128xbf16>, vector<16x128xf32> -> vector<16x128xf32>
      %18 = arith.addf %14, %17 : vector<16x128xf32>
      %c0_12 = arith.constant 0 : index
      %c0_13 = arith.constant 0 : index
      %19 = vector.load %arg9[%c0_12, %c0_13] : memref<1x128xf32, #tpu.memory_space<vmem>>, vector<1x128xf32>
      %20 = vector.broadcast %19 : vector<1x128xf32> to vector<16x128xf32>
      %21 = arith.addf %18, %20 : vector<16x128xf32>
      %c0_14 = arith.constant 0 : index
      %c0_15 = arith.constant 0 : index
      %22 = vector.load %arg10[%c0_14, %c0_15] : memref<128x128xf32, #tpu.memory_space<vmem>>, vector<128x128xf32>
      %cst_16 = arith.constant dense<0.000000e+00> : vector<16x128xf32>
      %23 = tpu.matmul %21, %22, %cst_16 {dimension_numbers = #tpu.dot_dimension_numbers<[1], [0], [0], [1], [0, 0, 1, 1], [], []>} : vector<16x128xf32>, vector<128x128xf32>, vector<16x128xf32> -> vector<16x128xf32>
      %c0_17 = arith.constant 0 : index
      %c0_18 = arith.constant 0 : index
      %24 = vector.load %arg11[%c0_17, %c0_18] : memref<1x128xf32, #tpu.memory_space<vmem>>, vector<1x128xf32>
      %25 = vector.broadcast %24 : vector<1x128xf32> to vector<16x128xf32>
      %26 = arith.addf %23, %25 : vector<16x128xf32>
      %c0_19 = arith.constant 0 : index
      %c0_20 = arith.constant 0 : index
      %27 = vector.load %arg12[%c0_19, %c0_20] : memref<16x128xf32, #tpu.memory_space<vmem>>, vector<16x128xf32>
      tpu.vector_store %arg12[%c0_19, %c0_20], %26 {strides = array<i32>} : memref<16x128xf32, #tpu.memory_space<vmem>>, vector<16x128xf32>,
    } else {
    }
    return
  }
  func.func @transform_0(%arg0: i32, %arg1: i32) -> (i32, i32) {
    %c0_i32 = arith.constant 0 : i32
    %c0_i32_0 = arith.constant 0 : i32
    return %arg1, %c0_i32 : i32, i32
  }
  func.func @transform_1(%arg0: i32, %arg1: i32) -> (i32, i32) {
    %c0_i32 = arith.constant 0 : i32
    %c0_i32_0 = arith.constant 0 : i32
    %c0_i32_1 = arith.constant 0 : i32
    return %c0_i32, %c0_i32_0 : i32, i32
  }
  func.func @transform_2(%arg0: i32, %arg1: i32) -> (i32, i32) {
    %c0_i32 = arith.constant 0 : i32
    %c0_i32_0 = arith.constant 0 : i32
    %c0_i32_1 = arith.constant 0 : i32
    return %c0_i32, %c0_i32_0 : i32, i32
  }
  func.func @transform_3(%arg0: i32, %arg1: i32) -> (i32, i32) {
    %c0_i32 = arith.constant 0 : i32
    %c0_i32_0 = arith.constant 0 : i32
    %c0_i32_1 = arith.constant 0 : i32
    return %c0_i32, %c0_i32_0 : i32, i32
  }
  func.func @transform_4(%arg0: i32, %arg1: i32) -> (i32, i32) {
    %c0_i32 = arith.constant 0 : i32
    %c0_i32_0 = arith.constant 0 : i32
    %c0_i32_1 = arith.constant 0 : i32
    return %c0_i32, %c0_i32_0 : i32, i32
  }
  func.func @transform_5(%arg0: i32, %arg1: i32) -> (i32, i32) {
    %c0_i32 = arith.constant 0 : i32
    %c0_i32_0 = arith.constant 0 : i32
    %c0_i32_1 = arith.constant 0 : i32
    return %c0_i32, %c0_i32_0 : i32, i32
  }
  func.func @transform_6(%arg0: i32, %arg1: i32) -> (i32, i32) {
    %c0_i32 = arith.constant 0 : i32
    %c0_i32_0 = arith.constant 0 : i32
    %c0_i32_1 = arith.constant 0 : i32
    return %c0_i32, %c0_i32_0 : i32, i32
  }
  func.func @transform_7(%arg0: i32, %arg1: i32) -> (i32, i32) {
    %c0_i32 = arith.constant 0 : i32
    %c0_i32_0 = arith.constant 0 : i32
    %c0_i32_1 = arith.constant 0 : i32
    return %c0_i32, %c0_i32_0 : i32, i32
  }
  func.func @transform_8(%arg0: i32, %arg1: i32) -> (i32, i32) {
    %c0_i32 = arith.constant 0 : i32
    %c0_i32_0 = arith.constant 0 : i32
    %c0_i32_1 = arith.constant 0 : i32
    return %c0_i32, %c0_i32_0 : i32, i32
  }
  func.func @transform_9(%arg0: i32, %arg1: i32) -> (i32, i32) {
    %c0_i32 = arith.constant 0 : i32
    %c0_i32_0 = arith.constant 0 : i32
    %c0_i32_1 = arith.constant 0 : i32
    return %c0_i32, %c0_i32_0 : i32, i32
  }
  func.func @transform_10(%arg0: i32, %arg1: i32) -> (i32, i32) {
    %c0_i32 = arith.constant 0 : i32
    %c0_i32_0 = arith.constant 0 : i32
    return %arg1, %c0_i32 : i32, i32
  }
}

</mosaic_0001>

<llo_original>
// kernel: sage_forward.1
$region0: #{sage_forward.1}
  #allocation0 [shape = 'u32[]', space=smem, size = 0x4, offset = 0x4, fixed_abs, tag = 'smem constant byte address 0x4 - core index']
  #allocation1 [shape = 'u32[144,128]{1,0:T(1,128)}', space=vmem, size = 0x12000, scoped, tag = 'internal scratch']
  #allocation2 [shape = 'bf16[16,128]{1,0:T(16,128)(2,1)}', space=vmem, size = 0x1000, scoped, tag = 'scratch operand']
  %s0 = inlined_call_operand.vmem [shape: bf16[16,16], index: 0, kind: input, shape index: {}]
  %s1 = inlined_call_operand.vmem [shape: bf16[16,128], index: 1, kind: input, shape index: {}]
  %s2 = inlined_call_operand.vmem [shape: bf16[128,128], index: 2, kind: input, shape index: {}]
  %s3 = inlined_call_operand.vmem [shape: bf16[128,128], index: 3, kind: input, shape index: {}]
  %s4 = inlined_call_operand.vmem [shape: f32[1,128], index: 4, kind: input, shape index: {}]
  %s5 = inlined_call_operand.vmem [shape: bf16[128,128], index: 5, kind: input, shape index: {}]
  %s6 = inlined_call_operand.vmem [shape: bf16[128,128], index: 6, kind: input, shape index: {}]
  %s7 = inlined_call_operand.vmem [shape: f32[1,128], index: 7, kind: input, shape index: {}]
  %s8 = inlined_call_operand.vmem [shape: f32[128,128], index: 8, kind: input, shape index: {}]
  %s9 = inlined_call_operand.vmem [shape: f32[1,128], index: 9, kind: input, shape index: {}]
  %s10 = inlined_call_operand.vmem [shape: f32[16,128], index: 10, kind: output, shape index: {}]
  %s11 = sld [smem:[#allocation0]]
  $region81: #{sage_forward.1} parent=0
    _
  %s13 = ssub.s32 1, %s11
  %s14 = scalar_select 0, %s13, %s11
  loop: start=0, step=1, limit=4
  $region2: #{sage_forward.1} parent=0 // loop_pre_header
    _
  $region3: #{sage_forward.1} parent=0 // loop_header
    %s16 = sphi 0, %s20
    %p17 = scmp.ge.s32.totalorder %s16, 4
    %s23 = sphi 0, %s35
    %s24 = sphi 0, %s31
    %s25 = sphi 0, %s23
    %s26 = sphi 0, %s24
    %s27 = sphi 0, %s25
    %s28 = sphi 0, %s26
    %s38 = sphi 0, %s40
    %s41 = sphi 0, %s38
    %s42 = sphi 0, %s41
    %s58 = sphi 0, %s42
    %s62 = sphi 0, %s62
    %s64 = sphi 0, %s62
    %s65 = sphi 0, %s64
    %s79 = sphi 0, %s65
    %s83 = sphi 0, %s83
    %s85 = sphi 0, %s83
    %s86 = sphi 0, %s85
    %s100 = sphi 0, %s86
    %s104 = sphi 0, %s104
    %s106 = sphi 0, %s104
    %s107 = sphi 0, %s106
    %s121 = sphi 0, %s107
    %s125 = sphi 0, %s125
    %s127 = sphi 0, %s125
    %s128 = sphi 0, %s127
    %s142 = sphi 0, %s128
    %s146 = sphi 0, %s146
    %s148 = sphi 0, %s146
    %s149 = sphi 0, %s148
    %s163 = sphi 0, %s149
    %s167 = sphi 0, %s167
    %s169 = sphi 0, %s167
    %s170 = sphi 0, %s169
    %s184 = sphi 0, %s170
    %s188 = sphi 0, %s188
    %s190 = sphi 0, %s188
    %s191 = sphi 0, %s190
    %s205 = sphi 0, %s191
    %s209 = sphi 0, %s209
    %s211 = sphi 0, %s209
    %s212 = sphi 0, %s211
    %s226 = sphi 0, %s212
    %s230 = sphi 0, %s230
    %s232 = sphi 0, %s230
    %s233 = sphi 0, %s232
    %s247 = sphi 0, %s233
    %s253 = sphi 0, %s255
    %s256 = sphi 0, %s253
    %s257 = sphi 0, %s256
    %s273 = sphi 0, %s257
  $region4: #{sage_forward.1} parent=0 // loop_header_branch
    %19 = sbr.rel (%p17) target = $region8
  $region5: #{sage_forward.1} parent=0 // loop_body
    %s21 = ssub.s32 %s16, 1
    %s22 = ssub.s32 %s16, 2
    %s29 = sadd.s32 1, %s24
    %p30 = scmp.ge.s32.totalorder %s29, 1
    %s31 = scalar_select %p30, 0, %s29
    %s32 = sadd.s32 1, %s23
    %s33 = scalar_select %p30, %s32, %s23
    %p34 = scmp.ge.s32.totalorder %s33, 2
    %s35 = scalar_select %p34, 0, %s33
    %s36 = ssub.s32 %s24, %s31
    %p37 = scmp.eq.s32.totalorder %s36, 0
    %s39 = sadd.s32 %s38, 1
    %s40 = scalar_select %p37, %s38, %s39
    %p43 = pneg %p37
    %p44 = scmp.eq.s32.totalorder %s16, 1
    %p45 = por %p43, %p44
    %p46 = scmp.ne.s32.totalorder %s38, %s41
    %p47 = scmp.eq.s32.totalorder %s16, 0
    %p48 = por %p46, %p47
    %p49 = scmp.ne.s32.totalorder %s38, %s41
    %p50 = scmp.eq.s32.totalorder %s21, 1
    %p51 = por %p49, %p50
    %p52 = scmp.ne.s32.totalorder %s41, %s42
    %p53 = scmp.eq.s32.totalorder %s21, 0
    %p54 = por %p52, %p53
    %p55 = scmp.ne.s32.totalorder %s41, %s42
    %p56 = scmp.eq.s32.totalorder %s22, 1
    %p57 = por %p55, %p56
    %p59 = scmp.ne.s32.totalorder %s42, %s58
    %p60 = scmp.eq.s32.totalorder %s22, 0
    %p61 = por %p59, %p60
    %s63 = sadd.s32 %s62, 1
    %p66 = scmp.eq.s32.totalorder %s16, 1
    %p67 = scmp.ne.s32.totalorder %s62, %s64
    %p68 = scmp.eq.s32.totalorder %s16, 0
    %p69 = por %p67, %p68
    %p70 = scmp.ne.s32.totalorder %s62, %s64
    %p71 = scmp.eq.s32.totalorder %s21, 1
    %p72 = por %p70, %p71
    %p73 = scmp.ne.s32.totalorder %s64, %s65
    %p74 = scmp.eq.s32.totalorder %s21, 0
    %p75 = por %p73, %p74
    %p76 = scmp.ne.s32.totalorder %s64, %s65
    %p77 = scmp.eq.s32.totalorder %s22, 1
    %p78 = por %p76, %p77
    %p80 = scmp.ne.s32.totalorder %s65, %s79
    %p81 = scmp.eq.s32.totalorder %s22, 0
    %p82 = por %p80, %p81
    %s84 = sadd.s32 %s83, 1
    %p87 = scmp.eq.s32.totalorder %s16, 1
    %p88 = scmp.ne.s32.totalorder %s83, %s85
    %p89 = scmp.eq.s32.totalorder %s16, 0
    %p90 = por %p88, %p89
    %p91 = scmp.ne.s32.totalorder %s83, %s85
    %p92 = scmp.eq.s32.totalorder %s21, 1
    %p93 = por %p91, %p92
    %p94 = scmp.ne.s32.totalorder %s85, %s86
    %p95 = scmp.eq.s32.totalorder %s21, 0
    %p96 = por %p94, %p95
    %p97 = scmp.ne.s32.totalorder %s85, %s86
    %p98 = scmp.eq.s32.totalorder %s22, 1
    %p99 = por %p97, %p98
    %p101 = scmp.ne.s32.totalorder %s86, %s100
    %p102 = scmp.eq.s32.totalorder %s22, 0
    %p103 = por %p101, %p102
    %s105 = sadd.s32 %s104, 1
    %p108 = scmp.eq.s32.totalorder %s16, 1
    %p109 = scmp.ne.s32.totalorder %s104, %s106
    %p110 = scmp.eq.s32.totalorder %s16, 0
    %p111 = por %p109, %p110
    %p112 = scmp.ne.s32.totalorder %s104, %s106
    %p113 = scmp.eq.s32.totalorder %s21, 1
    %p114 = por %p112, %p113
    %p115 = scmp.ne.s32.totalorder %s106, %s107
    %p116 = scmp.eq.s32.totalorder %s21, 0
    %p117 = por %p115, %p116
    %p118 = scmp.ne.s32.totalorder %s106, %s107
    %p119 = scmp.eq.s32.totalorder %s22, 1
    %p120 = por %p118, %p119
    %p122 = scmp.ne.s32.totalorder %s107, %s121
    %p123 = scmp.eq.s32.totalorder %s22, 0
    %p124 = por %p122, %p123
    %s126 = sadd.s32 %s125, 1
    %p129 = scmp.eq.s32.totalorder %s16, 1
    %p130 = scmp.ne.s32.totalorder %s125, %s127
    %p131 = scmp.eq.s32.totalorder %s16, 0
    %p132 = por %p130, %p131
    %p133 = scmp.ne.s32.totalorder %s125, %s127
    %p134 = scmp.eq.s32.totalorder %s21, 1
    %p135 = por %p133, %p134
    %p136 = scmp.ne.s32.totalorder %s127, %s128
    %p137 = scmp.eq.s32.totalorder %s21, 0
    %p138 = por %p136, %p137
    %p139 = scmp.ne.s32.totalorder %s127, %s128
    %p140 = scmp.eq.s32.totalorder %s22, 1
    %p141 = por %p139, %p140
    %p143 = scmp.ne.s32.totalorder %s128, %s142
    %p144 = scmp.eq.s32.totalorder %s22, 0
    %p145 = por %p143, %p144
    %s147 = sadd.s32 %s146, 1
    %p150 = scmp.eq.s32.totalorder %s16, 1
    %p151 = scmp.ne.s32.totalorder %s146, %s148
    %p152 = scmp.eq.s32.totalorder %s16, 0
    %p153 = por %p151, %p152
    %p154 = scmp.ne.s32.totalorder %s146, %s148
    %p155 = scmp.eq.s32.totalorder %s21, 1
    %p156 = por %p154, %p155
    %p157 = scmp.ne.s32.totalorder %s148, %s149
    %p158 = scmp.eq.s32.totalorder %s21, 0
    %p159 = por %p157, %p158
    %p160 = scmp.ne.s32.totalorder %s148, %s149
    %p161 = scmp.eq.s32.totalorder %s22, 1
    %p162 = por %p160, %p161
    %p164 = scmp.ne.s32.totalorder %s149, %s163
    %p165 = scmp.eq.s32.totalorder %s22, 0
    %p166 = por %p164, %p165
    %s168 = sadd.s32 %s167, 1
    %p171 = scmp.eq.s32.totalorder %s16, 1
    %p172 = scmp.ne.s32.totalorder %s167, %s169
    %p173 = scmp.eq.s32.totalorder %s16, 0
    %p174 = por %p172, %p173
    %p175 = scmp.ne.s32.totalorder %s167, %s169
    %p176 = scmp.eq.s32.totalorder %s21, 1
    %p177 = por %p175, %p176
    %p178 = scmp.ne.s32.totalorder %s169, %s170
    %p179 = scmp.eq.s32.totalorder %s21, 0
    %p180 = por %p178, %p179
    %p181 = scmp.ne.s32.totalorder %s169, %s170
    %p182 = scmp.eq.s32.totalorder %s22, 1
    %p183 = por %p181, %p182
    %p185 = scmp.ne.s32.totalorder %s170, %s184
    %p186 = scmp.eq.s32.totalorder %s22, 0
    %p187 = por %p185, %p186
    %s189 = sadd.s32 %s188, 1
    %p192 = scmp.eq.s32.totalorder %s16, 1
    %p193 = scmp.ne.s32.totalorder %s188, %s190
    %p194 = scmp.eq.s32.totalorder %s16, 0
    %p195 = por %p193, %p194
    %p196 = scmp.ne.s32.totalorder %s188, %s190
    %p197 = scmp.eq.s32.totalorder %s21, 1
    %p198 = por %p196, %p197
    %p199 = scmp.ne.s32.totalorder %s190, %s191
    %p200 = scmp.eq.s32.totalorder %s21, 0
    %p201 = por %p199, %p200
    %p202 = scmp.ne.s32.totalorder %s190, %s191
    %p203 = scmp.eq.s32.totalorder %s22, 1
    %p204 = por %p202, %p203
    %p206 = scmp.ne.s32.totalorder %s191, %s205
    %p207 = scmp.eq.s32.totalorder %s22, 0
    %p208 = por %p206, %p207
    %s210 = sadd.s32 %s209, 1
    %p213 = scmp.eq.s32.totalorder %s16, 1
    %p214 = scmp.ne.s32.totalorder %s209, %s211
    %p215 = scmp.eq.s32.totalorder %s16, 0
    %p216 = por %p214, %p215
    %p217 = scmp.ne.s32.totalorder %s209, %s211
    %p218 = scmp.eq.s32.totalorder %s21, 1
    %p219 = por %p217, %p218
    %p220 = scmp.ne.s32.totalorder %s211, %s212
    %p221 = scmp.eq.s32.totalorder %s21, 0
    %p222 = por %p220, %p221
    %p223 = scmp.ne.s32.totalorder %s211, %s212
    %p224 = scmp.eq.s32.totalorder %s22, 1
    %p225 = por %p223, %p224
    %p227 = scmp.ne.s32.totalorder %s212, %s226
    %p228 = scmp.eq.s32.totalorder %s22, 0
    %p229 = por %p227, %p228
    %s231 = sadd.s32 %s230, 1
    %p234 = scmp.eq.s32.totalorder %s16, 1
    %p235 = scmp.ne.s32.totalorder %s230, %s232
    %p236 = scmp.eq.s32.totalorder %s16, 0
    %p237 = por %p235, %p236
    %p238 = scmp.ne.s32.totalorder %s230, %s232
    %p239 = scmp.eq.s32.totalorder %s21, 1
    %p240 = por %p238, %p239
    %p241 = scmp.ne.s32.totalorder %s232, %s233
    %p242 = scmp.eq.s32.totalorder %s21, 0
    %p243 = por %p241, %p242
    %p244 = scmp.ne.s32.totalorder %s232, %s233
    %p245 = scmp.eq.s32.totalorder %s22, 1
    %p246 = por %p244, %p245
    %p248 = scmp.ne.s32.totalorder %s233, %s247
    %p249 = scmp.eq.s32.totalorder %s22, 0
    %p250 = por %p248, %p249
    %s251 = ssub.s32 %s24, %s31
    %p252 = scmp.eq.s32.totalorder %s251, 0
    %s254 = sadd.s32 %s253, 1
    %s255 = scalar_select %p252, %s253, %s254
    %p258 = pneg %p252
    %p259 = scmp.eq.s32.totalorder %s16, 1
    %p260 = por %p258, %p259
    %p261 = scmp.ne.s32.totalorder %s253, %s256
    %p262 = scmp.eq.s32.totalorder %s16, 0
    %p263 = por %p261, %p262
    %p264 = scmp.ne.s32.totalorder %s253, %s256
    %p265 = scmp.eq.s32.totalorder %s21, 1
    %p266 = por %p264, %p265
    %p267 = scmp.ne.s32.totalorder %s256, %s257
    %p268 = scmp.eq.s32.totalorder %s21, 0
    %p269 = por %p267, %p268
    %p270 = scmp.ne.s32.totalorder %s256, %s257
    %p271 = scmp.eq.s32.totalorder %s22, 1
    %p272 = por %p270, %p271
    %p274 = scmp.ne.s32.totalorder %s257, %s273
    %p275 = scmp.eq.s32.totalorder %s22, 0
    %p276 = por %p274, %p275
    %p277 = scmp.le.s32.totalorder 1, %s16
    %p278 = scmp.lt.s32.totalorder %s16, 3
    %p279 = pnand %p277, %p278
    %p280 = pneg %p279
    // Predicated region
    $region9: #{sage_forward.1} parent=5 // pred_check
      _
    $region10: #{sage_forward.1} parent=5 // pred_check_branch
      %282 = sbr.rel (%p279) target = $region12
    $region11: #{sage_forward.1} parent=5 // pred_region
      %s283 = ssub.s32 %s16, 1
      // Predicated region
      $region13: #{sage_forward.1} parent=11 // pred_check
        %p284 = pneg %p54
      $region14: #{sage_forward.1} parent=11 // pred_check_branch
        %286 = sbr.rel (%p284) target = $region16
      $region15: #{sage_forward.1} parent=11 // pred_region
        %s287 = smul.u32 2, %s26
        %p288 = scmp.lt.s32.totalorder %s287, 1
        %s289 = scalar_select %p288, %s287, 1
        %s290 = smul.addr %s289, 4
        %s291 = scalar_lea.vmem %s0, %s290
        %s292 = smul.u32 2, %s26
      $region16: #{sage_forward.1} parent=11 // pred_fallthru
        _
      // Predicated region
      $region17: #{sage_forward.1} parent=11 // pred_check
        %p293 = pneg %p75
      $region18: #{sage_forward.1} parent=11 // pred_check_branch
        %295 = sbr.rel (%p293) target = $region20
      $region19: #{sage_forward.1} parent=11 // pred_region
        _
      $region20: #{sage_forward.1} parent=11 // pred_fallthru
        _
      // Predicated region
      $region21: #{sage_forward.1} parent=11 // pred_check
        %p296 = pneg %p96
      $region22: #{sage_forward.1} parent=11 // pred_check_branch
        %298 = sbr.rel (%p296) target = $region24
      $region23: #{sage_forward.1} parent=11 // pred_region
        _
      $region24: #{sage_forward.1} parent=11 // pred_fallthru
        _
      // Predicated region
      $region25: #{sage_forward.1} parent=11 // pred_check
        %p299 = pneg %p117
      $region26: #{sage_forward.1} parent=11 // pred_check_branch
        %301 = sbr.rel (%p299) target = $region28
      $region27: #{sage_forward.1} parent=11 // pred_region
        _
      $region28: #{sage_forward.1} parent=11 // pred_fallthru
        _
      // Predicated region
      $region29: #{sage_forward.1} parent=11 // pred_check
        %p302 = pneg %p138
      $region30: #{sage_forward.1} parent=11 // pred_check_branch
        %304 = sbr.rel (%p302) target = $region32
      $region31: #{sage_forward.1} parent=11 // pred_region
        _
      $region32: #{sage_forward.1} parent=11 // pred_fallthru
        _
      // Predicated region
      $region33: #{sage_forward.1} parent=11 // pred_check
        %p305 = pneg %p159
      $region34: #{sage_forward.1} parent=11 // pred_check_branch
        %307 = sbr.rel (%p305) target = $region36
      $region35: #{sage_forward.1} parent=11 // pred_region
        _
      $region36: #{sage_forward.1} parent=11 // pred_fallthru
        _
      // Predicated region
      $region37: #{sage_forward.1} parent=11 // pred_check
        %p308 = pneg %p180
      $region38: #{sage_forward.1} parent=11 // pred_check_branch
        %310 = sbr.rel (%p308) target = $region40
      $region39: #{sage_forward.1} parent=11 // pred_region
        _
      $region40: #{sage_forward.1} parent=11 // pred_fallthru
        _
      // Predicated region
      $region41: #{sage_forward.1} parent=11 // pred_check
        %p311 = pneg %p201
      $region42: #{sage_forward.1} parent=11 // pred_check_branch
        %313 = sbr.rel (%p311) target = $region44
      $region43: #{sage_forward.1} parent=11 // pred_region
        _
      $region44: #{sage_forward.1} parent=11 // pred_fallthru
        _
      // Predicated region
      $region45: #{sage_forward.1} parent=11 // pred_check
        %p314 = pneg %p222
      $region46: #{sage_forward.1} parent=11 // pred_check_branch
        %316 = sbr.rel (%p314) target = $region48
      $region47: #{sage_forward.1} parent=11 // pred_region
        _
      $region48: #{sage_forward.1} parent=11 // pred_fallthru
        _
      // Predicated region
      $region49: #{sage_forward.1} parent=11 // pred_check
        %p317 = pneg %p243
      $region50: #{sage_forward.1} parent=11 // pred_check_branch
        %319 = sbr.rel (%p317) target = $region52
      $region51: #{sage_forward.1} parent=11 // pred_region
        _
      $region52: #{sage_forward.1} parent=11 // pred_fallthru
        _
    $region12: #{sage_forward.1} parent=5 // pred_fallthru
      _
    %p320 = scmp.lt.s32.totalorder %s16, 2
    // Predicated region
    $region53: #{sage_forward.1} parent=5 // pred_check
      %p321 = pneg %p320
    $region54: #{sage_forward.1} parent=5 // pred_check_branch
      %323 = sbr.rel (%p321) target = $region56
    $region55: #{sage_forward.1} parent=5 // pred_region
      _
    $region56: #{sage_forward.1} parent=5 // pred_fallthru
      _
    %p324 = scmp.le.s32.totalorder 1, %s16
    %p325 = scmp.lt.s32.totalorder %s16, 3
    %p326 = pnand %p324, %p325
    %p327 = pneg %p326
    // Predicated region
    $region57: #{sage_forward.1} parent=5 // pred_check
      _
    $region58: #{sage_forward.1} parent=5 // pred_check_branch
      %329 = sbr.rel (%p326) target = $region60
    $region59: #{sage_forward.1} parent=5 // pred_region
      %s330 = ssub.s32 %s16, 1
      %s331 = smul.u32 2, %s26
      %p332 = scmp.lt.s32.totalorder %s331, 1
      %s333 = scalar_select %p332, %s331, 1
      %s334 = smul.addr %s333, 4
      %s335 = scalar_lea.vmem %s0, %s334
      %p336 = pneg %p54
      %p337 = pneg %p51
      %p338 = pneg %p75
      %p339 = pneg %p72
      %p340 = pneg %p96
      %p341 = pneg %p93
      %p342 = pneg %p117
      %p343 = pneg %p114
      %p344 = pneg %p138
      %p345 = pneg %p135
      %p346 = pneg %p159
      %p347 = pneg %p156
      %p348 = pneg %p180
      %p349 = pneg %p177
      %p350 = pneg %p201
      %p351 = pneg %p198
      %p352 = pneg %p222
      %p353 = pneg %p219
      %p354 = pneg %p243
      %p355 = pneg %p240
      %p356 = pneg %p269
      %p357 = pneg %p266
      %s358 = smul.u32 2, %s26
      %p359 = scmp.lt.s32.totalorder %s358, 1
      %s360 = scalar_select %p359, %s358, 1
      %s361 = smul.addr %s360, 8
      %s362 = scalar_lea.vmem %s10, %s361
      %s363 = smul.u32 2, %s26
      %p364 = scmp.lt.s32.totalorder %s363, 1
      %s365 = scalar_select %p364, %s363, 1
      %s366 = smul.addr %s365, 4
      %s367 = scalar_lea.vmem %s0, %s366
      %s368 = smul.u32 2, %s26
      %s369 = smul.u32 2, %s26
      %p370 = scmp.lt.s32.totalorder %s369, 1
      %s371 = scalar_select %p370, %s369, 1
      %s372 = smul.addr %s371, 8
      %s373 = scalar_lea.vmem %s10, %s372
      %s374 = smul.u32 2, %s26
      %s376 = smul.u32 %s26, 16
      %p377 = scmp.eq.s32.totalorder %s25, 0
      // Predicated region
      $region61: #{sage_forward.1} parent=59 // pred_check
        %p378 = pneg %p377
      $region62: #{sage_forward.1} parent=59 // pred_check_branch
        %380 = sbr.rel (%p378) target = $region64
      $region63: #{sage_forward.1} parent=59 // pred_region
        %v381 = vld [vmem:[%s367] sm:$0xf]
        %v382 = vld [vmem:[%s367 + $0x4] sm:$0xf]
        %v383 = vld [vmem:[%s1] sm:$0xf]
        %v384 = vld [vmem:[%s1 + $0x4] sm:$0xf]
        %v387 = vunpack.c.l.b16 %v381
        %v388 = vunpack.c.l.b16 %v382
        %v389 = vpack.c.b16 %v388, %v387
        %v392 = vunpack.c.l.b16 %v383
        %v393 = vunpack.c.l.b16 %v384
        %v394 = vpack.c.b16 %v393, %v392
        %vm396 = vcmask 130048
        %v398 = vsel %vm396, %v389, 0
        %400 = vmatprep.subr.bf16.mxu0 0
        %401 = vmatpush1.bf16.msra.mxu0 %v394
        %402 = vmatprep.subr.bf16.mxu0 0
        %403 = vmatpush1.bf16.msra.mxu0 0
        %404 = vmatprep.subr.bf16.mxu0 0
        %405 = vmatpush1.bf16.msra.mxu0 0
        %406 = vmatprep.subr.bf16.mxu0 0
        %407 = vmatpush1.bf16.msra.mxu0 0
        %408 = vmatprep.subr.bf16.mxu0 0
        %409 = vmatpush1.bf16.msra.mxu0 0
        %410 = vmatprep.subr.bf16.mxu0 0
        %411 = vmatpush1.bf16.msra.mxu0 0
        %412 = vmatprep.subr.bf16.mxu0 0
        %413 = vmatpush1.bf16.msra.mxu0 0
        %414 = vmatprep.subr.bf16.mxu0 0
        %415 = vmatpush1.bf16.msra.mxu0 0
        %416 = vmatprep.subr.bf16.mxu0 0
        %417 = vmatpush1.bf16.msra.mxu0 0
        %418 = vmatprep.subr.bf16.mxu0 0
        %419 = vmatpush1.bf16.msra.mxu0 0
        %420 = vmatprep.subr.bf16.mxu0 0
        %421 = vmatpush1.bf16.msra.mxu0 0
        %422 = vmatprep.subr.bf16.mxu0 0
        %423 = vmatpush1.bf16.msra.mxu0 0
        %424 = vmatprep.subr.bf16.mxu0 0
        %425 = vmatpush1.bf16.msra.mxu0 0
        %426 = vmatprep.subr.bf16.mxu0 0
        %427 = vmatpush1.bf16.msra.mxu0 0
        %428 = vmatprep.subr.bf16.mxu0 0
        %429 = vmatpush1.bf16.msra.mxu0 0
        %430 = vmatprep.subr.bf16.mxu0 0
        %431 = vmatpush1.bf16.msra.mxu0 0
        %432 = vmatprep.mubr.bf16.mxu0 0
        %433 = vmatmul.mubr.bf16.gmra.mrb[0].mxu0 %v398
        %v434 = vpop.f32.mrb[0].mxu0
        %v435 = vadd.f32 0.0, %v434
        %v436 = vpop.f32.mrb[0].mxu0
        %v437 = vpop.f32.mrb[0].mxu0
        %v438 = vadd.f32 0.0, %v437
        %v439 = vpop.f32.mrb[0].mxu0
        %440 = vdwg.mxu0
        %s441 = sshra.s32 %s376, 3
        %s442 = sand.u32 %s376, 7
        %s443 = smul.addr %s441, 4
        %s444 = scalar_lea.vmem %s1, %s443
        %v445 = vld [vmem:[%s444] sm:$0xf]
        %v446 = vld [vmem:[%s444 + $0x4] sm:$0xf]
        %v447 = vld [vmem:[%s2] sm:$0xf]
        %v448 = vld [vmem:[%s2 + $0x4] sm:$0xf]
        %v449 = vld [vmem:[%s2 + $0x8] sm:$0xf]
        %v450 = vld [vmem:[%s2 + $0xc] sm:$0xf]
        %v451 = vld [vmem:[%s2 + $0x10] sm:$0xf]
        %v452 = vld [vmem:[%s2 + $0x14] sm:$0xf]
        %v453 = vld [vmem:[%s2 + $0x18] sm:$0xf]
        %v454 = vld [vmem:[%s2 + $0x1c] sm:$0xf]
        %v455 = vld [vmem:[%s2 + $0x20] sm:$0xf]
        %v456 = vld [vmem:[%s2 + $0x24] sm:$0xf]
        %v457 = vld [vmem:[%s2 + $0x28] sm:$0xf]
        %v458 = vld [vmem:[%s2 + $0x2c] sm:$0xf]
        %v459 = vld [vmem:[%s2 + $0x30] sm:$0xf]
        %v460 = vld [vmem:[%s2 + $0x34] sm:$0xf]
        %v461 = vld [vmem:[%s2 + $0x38] sm:$0xf]
        %v462 = vld [vmem:[%s2 + $0x3c] sm:$0xf]
        %v463 = vpack.c.bf16 %v438, %v435
        %v464 = vld [vmem:[%s3] sm:$0xf]
        %v465 = vld [vmem:[%s3 + $0x4] sm:$0xf]
        %v466 = vld [vmem:[%s3 + $0x8] sm:$0xf]
        %v467 = vld [vmem:[%s3 + $0xc] sm:$0xf]
        %v468 = vld [vmem:[%s3 + $0x10] sm:$0xf]
        %v469 = vld [vmem:[%s3 + $0x14] sm:$0xf]
        %v470 = vld [vmem:[%s3 + $0x18] sm:$0xf]
        %v471 = vld [vmem:[%s3 + $0x1c] sm:$0xf]
        %v472 = vld [vmem:[%s3 + $0x20] sm:$0xf]
        %v473 = vld [vmem:[%s3 + $0x24] sm:$0xf]
        %v474 = vld [vmem:[%s3 + $0x28] sm:$0xf]
        %v475 = vld [vmem:[%s3 + $0x2c] sm:$0xf]
        %v476 = vld [vmem:[%s3 + $0x30] sm:$0xf]
        %v477 = vld [vmem:[%s3 + $0x34] sm:$0xf]
        %v478 = vld [vmem:[%s3 + $0x38] sm:$0xf]
        %v479 = vld [vmem:[%s3 + $0x3c] sm:$0xf]
        %v496 = vunpack.c.l.b16 %v464
        %v497 = vunpack.c.l.b16 %v465
        %v498 = vunpack.c.l.b16 %v466
        %v499 = vunpack.c.l.b16 %v467
        %v500 = vunpack.c.l.b16 %v468
        %v501 = vunpack.c.l.b16 %v469
        %v502 = vunpack.c.l.b16 %v470
        %v503 = vunpack.c.l.b16 %v471
        %v504 = vunpack.c.l.b16 %v472
        %v505 = vunpack.c.l.b16 %v473
        %v506 = vunpack.c.l.b16 %v474
        %v507 = vunpack.c.l.b16 %v475
        %v508 = vunpack.c.l.b16 %v476
        %v509 = vunpack.c.l.b16 %v477
        %v510 = vunpack.c.l.b16 %v478
        %v511 = vunpack.c.l.b16 %v479
        %v512 = vpack.c.b16 %v497, %v496
        %v513 = vpack.c.b16 %v499, %v498
        %v514 = vpack.c.b16 %v501, %v500
        %v515 = vpack.c.b16 %v503, %v502
        %v516 = vpack.c.b16 %v505, %v504
        %v517 = vpack.c.b16 %v507, %v506
        %v518 = vpack.c.b16 %v509, %v508
        %v519 = vpack.c.b16 %v511, %v510
        %528 = vmatprep.subr.bf16.mxu0 0
        %529 = vmatpush1.bf16.msra.mxu0 %v512
        %530 = vmatprep.subr.bf16.mxu0 0
        %531 = vmatpush1.bf16.msra.mxu0 %v513
        %532 = vmatprep.subr.bf16.mxu0 0
        %533 = vmatpush1.bf16.msra.mxu0 %v514
        %534 = vmatprep.subr.bf16.mxu0 0
        %535 = vmatpush1.bf16.msra.mxu0 %v515
        %536 = vmatprep.subr.bf16.mxu0 0
        %537 = vmatpush1.bf16.msra.mxu0 %v516
        %538 = vmatprep.subr.bf16.mxu0 0
        %539 = vmatpush1.bf16.msra.mxu0 %v517
        %540 = vmatprep.subr.bf16.mxu0 0
        %541 = vmatpush1.bf16.msra.mxu0 %v518
        %542 = vmatprep.subr.bf16.mxu0 0
        %543 = vmatpush1.bf16.msra.mxu0 %v519
        %544 = vmatprep.subr.bf16.mxu0 0
        %545 = vmatpush1.bf16.msra.mxu0 0
        %546 = vmatprep.subr.bf16.mxu0 0
        %547 = vmatpush1.bf16.msra.mxu0 0
        %548 = vmatprep.subr.bf16.mxu0 0
        %549 = vmatpush1.bf16.msra.mxu0 0
        %550 = vmatprep.subr.bf16.mxu0 0
        %551 = vmatpush1.bf16.msra.mxu0 0
        %552 = vmatprep.subr.bf16.mxu0 0
        %553 = vmatpush1.bf16.msra.mxu0 0
        %554 = vmatprep.subr.bf16.mxu0 0
        %555 = vmatpush1.bf16.msra.mxu0 0
        %556 = vmatprep.subr.bf16.mxu0 0
        %557 = vmatpush1.bf16.msra.mxu0 0
        %558 = vmatprep.subr.bf16.mxu0 0
        %559 = vmatpush1.bf16.msra.mxu0 0
        %560 = vmatprep.mubr.bf16.mxu0 0
        %561 = vmatmul.mubr.bf16.gmra.mrb[0].mxu0 %v463
        %v562 = vpop.f32.mrb[0].mxu0
        %v563 = vadd.f32 0.0, %v562
        %v564 = vpop.f32.mrb[0].mxu0
        %v565 = vpop.f32.mrb[0].mxu0
        %v566 = vadd.f32 0.0, %v565
        %v567 = vpop.f32.mrb[0].mxu0
        %568 = vdwg.mxu0
        %v571 = vunpack.c.l.b16 %v445
        %v572 = vunpack.c.l.b16 %v446
        %v573 = vpack.c.b16 %v572, %v571
        %v591 = vunpack.c.l.b16 %v447
        %v592 = vunpack.c.l.b16 %v448
        %v593 = vunpack.c.l.b16 %v449
        %v594 = vunpack.c.l.b16 %v450
        %v595 = vunpack.c.l.b16 %v451
        %v596 = vunpack.c.l.b16 %v452
        %v597 = vunpack.c.l.b16 %v453
        %v598 = vunpack.c.l.b16 %v454
        %v599 = vunpack.c.l.b16 %v455
        %v600 = vunpack.c.l.b16 %v456
        %v601 = vunpack.c.l.b16 %v457
        %v602 = vunpack.c.l.b16 %v458
        %v603 = vunpack.c.l.b16 %v459
        %v604 = vunpack.c.l.b16 %v460
        %v605 = vunpack.c.l.b16 %v461
        %v606 = vunpack.c.l.b16 %v462
        %v607 = vpack.c.b16 %v592, %v591
        %v608 = vpack.c.b16 %v594, %v593
        %v609 = vpack.c.b16 %v596, %v595
        %v610 = vpack.c.b16 %v598, %v597
        %v611 = vpack.c.b16 %v600, %v599
        %v612 = vpack.c.b16 %v602, %v601
        %v613 = vpack.c.b16 %v604, %v603
        %v614 = vpack.c.b16 %v606, %v605
        %623 = vmatprep.subr.bf16.mxu0 0
        %624 = vmatpush1.bf16.msra.mxu0 %v607
        %625 = vmatprep.subr.bf16.mxu0 0
        %626 = vmatpush1.bf16.msra.mxu0 %v608
        %627 = vmatprep.subr.bf16.mxu0 0
        %628 = vmatpush1.bf16.msra.mxu0 %v609
        %629 = vmatprep.subr.bf16.mxu0 0
        %630 = vmatpush1.bf16.msra.mxu0 %v610
        %631 = vmatprep.subr.bf16.mxu0 0
        %632 = vmatpush1.bf16.msra.mxu0 %v611
        %633 = vmatprep.subr.bf16.mxu0 0
        %634 = vmatpush1.bf16.msra.mxu0 %v612
        %635 = vmatprep.subr.bf16.mxu0 0
        %636 = vmatpush1.bf16.msra.mxu0 %v613
        %637 = vmatprep.subr.bf16.mxu0 0
        %638 = vmatpush1.bf16.msra.mxu0 %v614
        %639 = vmatprep.subr.bf16.mxu0 0
        %640 = vmatpush1.bf16.msra.mxu0 0
        %641 = vmatprep.subr.bf16.mxu0 0
        %642 = vmatpush1.bf16.msra.mxu0 0
        %643 = vmatprep.subr.bf16.mxu0 0
        %644 = vmatpush1.bf16.msra.mxu0 0
        %645 = vmatprep.subr.bf16.mxu0 0
        %646 = vmatpush1.bf16.msra.mxu0 0
        %647 = vmatprep.subr.bf16.mxu0 0
        %648 = vmatpush1.bf16.msra.mxu0 0
        %649 = vmatprep.subr.bf16.mxu0 0
        %650 = vmatpush1.bf16.msra.mxu0 0
        %651 = vmatprep.subr.bf16.mxu0 0
        %652 = vmatpush1.bf16.msra.mxu0 0
        %653 = vmatprep.subr.bf16.mxu0 0
        %654 = vmatpush1.bf16.msra.mxu0 0
        %655 = vmatprep.mubr.bf16.mxu0 0
        %656 = vmatmul.mubr.bf16.gmra.mrb[0].mxu0 %v573
        %v657 = vpop.f32.mrb[0].mxu0
        %v658 = vadd.f32 %v563, %v657
        %v659 = vpop.f32.mrb[0].mxu0
        %v660 = vpop.f32.mrb[0].mxu0
        %v661 = vadd.f32 %v566, %v660
        %v662 = vpop.f32.mrb[0].mxu0
        %663 = vdwg.mxu0
        %v664 = vld [vmem:[%s4] sm:$0x1]
        %v666 = vlaneseq
        %v667 = vshrl.u32 %v666, 7
        %v668 = vsub.s32 0, %v667
        %v669 = vrot.slane %v664, %v668
        %v671 = vadd.f32 %v658, %v669
        %v672 = vadd.f32 %v661, %v669
        %v673 = vmax.f32 %v671, 0.0
        %v674 = vmax.f32 %v672, 0.0
        %v675 = vpack.c.bf16 %v674, %v673
        %s676 = sshra.s32 %s376, 4
        %s677 = sand.u32 %s376, 15
        %s678 = smul.addr %s676, 8
        %s679 = scalar_lea.vmem [#allocation2], %s678
        %680 = vst [vmem:[%s679] sm:$0xff] %v675
        %681 = vst [vmem:[%s373] sm:$0xff] 0.0
        %682 = vst [vmem:[%s373 + $0x8] sm:$0xff] 0.0
      $region64: #{sage_forward.1} parent=59 // pred_fallthru
        _
      %p683 = scmp.eq.s32.totalorder %s25, 1
      // Predicated region
      $region65: #{sage_forward.1} parent=59 // pred_check
        %p684 = pneg %p683
      $region66: #{sage_forward.1} parent=59 // pred_check_branch
        %686 = sbr.rel (%p684) target = $region68
      $region67: #{sage_forward.1} parent=59 // pred_region
        %v687 = vld [vmem:[%s367] sm:$0xf]
        %v688 = vld [vmem:[%s367 + $0x4] sm:$0xf]
        %v689 = vld [vmem:[#allocation2] sm:$0xff]
        %v692 = vunpack.c.l.b16 %v687
        %v693 = vunpack.c.l.b16 %v688
        %v694 = vpack.c.b16 %v693, %v692
        %vm695 = vcmask 130048
        %v697 = vsel %vm695, %v694, 0
        %699 = vmatprep.subr.bf16.mxu0 0
        %700 = vmatpush1.bf16.msra.mxu0 %v689
        %701 = vmatprep.subr.bf16.mxu0 0
        %702 = vmatpush1.bf16.msra.mxu0 0
        %703 = vmatprep.subr.bf16.mxu0 0
        %704 = vmatpush1.bf16.msra.mxu0 0
        %705 = vmatprep.subr.bf16.mxu0 0
        %706 = vmatpush1.bf16.msra.mxu0 0
        %707 = vmatprep.subr.bf16.mxu0 0
        %708 = vmatpush1.bf16.msra.mxu0 0
        %709 = vmatprep.subr.bf16.mxu0 0
        %710 = vmatpush1.bf16.msra.mxu0 0
        %711 = vmatprep.subr.bf16.mxu0 0
        %712 = vmatpush1.bf16.msra.mxu0 0
        %713 = vmatprep.subr.bf16.mxu0 0
        %714 = vmatpush1.bf16.msra.mxu0 0
        %715 = vmatprep.subr.bf16.mxu0 0
        %716 = vmatpush1.bf16.msra.mxu0 0
        %717 = vmatprep.subr.bf16.mxu0 0
        %718 = vmatpush1.bf16.msra.mxu0 0
        %719 = vmatprep.subr.bf16.mxu0 0
        %720 = vmatpush1.bf16.msra.mxu0 0
        %721 = vmatprep.subr.bf16.mxu0 0
        %722 = vmatpush1.bf16.msra.mxu0 0
        %723 = vmatprep.subr.bf16.mxu0 0
        %724 = vmatpush1.bf16.msra.mxu0 0
        %725 = vmatprep.subr.bf16.mxu0 0
        %726 = vmatpush1.bf16.msra.mxu0 0
        %727 = vmatprep.subr.bf16.mxu0 0
        %728 = vmatpush1.bf16.msra.mxu0 0
        %729 = vmatprep.subr.bf16.mxu0 0
        %730 = vmatpush1.bf16.msra.mxu0 0
        %731 = vmatprep.mubr.bf16.mxu0 0
        %732 = vmatmul.mubr.bf16.gmra.mrb[0].mxu0 %v697
        %v733 = vpop.f32.mrb[0].mxu0
        %v734 = vadd.f32 0.0, %v733
        %v735 = vpop.f32.mrb[0].mxu0
        %v736 = vpop.f32.mrb[0].mxu0
        %v737 = vadd.f32 0.0, %v736
        %v738 = vpop.f32.mrb[0].mxu0
        %739 = vdwg.mxu0
        %s740 = sshra.s32 %s376, 4
        %s741 = sand.u32 %s376, 15
        %s742 = smul.addr %s740, 8
        %s743 = scalar_lea.vmem [#allocation2], %s742
        %v744 = vld [vmem:[%s743] sm:$0xff]
        %v745 = vld [vmem:[%s5] sm:$0xf]
        %v746 = vld [vmem:[%s5 + $0x4] sm:$0xf]
        %v747 = vld [vmem:[%s5 + $0x8] sm:$0xf]
        %v748 = vld [vmem:[%s5 + $0xc] sm:$0xf]
        %v749 = vld [vmem:[%s5 + $0x10] sm:$0xf]
        %v750 = vld [vmem:[%s5 + $0x14] sm:$0xf]
        %v751 = vld [vmem:[%s5 + $0x18] sm:$0xf]
        %v752 = vld [vmem:[%s5 + $0x1c] sm:$0xf]
        %v753 = vld [vmem:[%s5 + $0x20] sm:$0xf]
        %v754 = vld [vmem:[%s5 + $0x24] sm:$0xf]
        %v755 = vld [vmem:[%s5 + $0x28] sm:$0xf]
        %v756 = vld [vmem:[%s5 + $0x2c] sm:$0xf]
        %v757 = vld [vmem:[%s5 + $0x30] sm:$0xf]
        %v758 = vld [vmem:[%s5 + $0x34] sm:$0xf]
        %v759 = vld [vmem:[%s5 + $0x38] sm:$0xf]
        %v760 = vld [vmem:[%s5 + $0x3c] sm:$0xf]
        %v761 = vpack.c.bf16 %v737, %v734
        %v762 = vld [vmem:[%s6] sm:$0xf]
        %v763 = vld [vmem:[%s6 + $0x4] sm:$0xf]
        %v764 = vld [vmem:[%s6 + $0x8] sm:$0xf]
        %v765 = vld [vmem:[%s6 + $0xc] sm:$0xf]
        %v766 = vld [vmem:[%s6 + $0x10] sm:$0xf]
        %v767 = vld [vmem:[%s6 + $0x14] sm:$0xf]
        %v768 = vld [vmem:[%s6 + $0x18] sm:$0xf]
        %v769 = vld [vmem:[%s6 + $0x1c] sm:$0xf]
        %v770 = vld [vmem:[%s6 + $0x20] sm:$0xf]
        %v771 = vld [vmem:[%s6 + $0x24] sm:$0xf]
        %v772 = vld [vmem:[%s6 + $0x28] sm:$0xf]
        %v773 = vld [vmem:[%s6 + $0x2c] sm:$0xf]
        %v774 = vld [vmem:[%s6 + $0x30] sm:$0xf]
        %v775 = vld [vmem:[%s6 + $0x34] sm:$0xf]
        %v776 = vld [vmem:[%s6 + $0x38] sm:$0xf]
        %v777 = vld [vmem:[%s6 + $0x3c] sm:$0xf]
        %v794 = vunpack.c.l.b16 %v762
        %v795 = vunpack.c.l.b16 %v763
        %v796 = vunpack.c.l.b16 %v764
        %v797 = vunpack.c.l.b16 %v765
        %v798 = vunpack.c.l.b16 %v766
        %v799 = vunpack.c.l.b16 %v767
        %v800 = vunpack.c.l.b16 %v768
        %v801 = vunpack.c.l.b16 %v769
        %v802 = vunpack.c.l.b16 %v770
        %v803 = vunpack.c.l.b16 %v771
        %v804 = vunpack.c.l.b16 %v772
        %v805 = vunpack.c.l.b16 %v773
        %v806 = vunpack.c.l.b16 %v774
        %v807 = vunpack.c.l.b16 %v775
        %v808 = vunpack.c.l.b16 %v776
        %v809 = vunpack.c.l.b16 %v777
        %v810 = vpack.c.b16 %v795, %v794
        %v811 = vpack.c.b16 %v797, %v796
        %v812 = vpack.c.b16 %v799, %v798
        %v813 = vpack.c.b16 %v801, %v800
        %v814 = vpack.c.b16 %v803, %v802
        %v815 = vpack.c.b16 %v805, %v804
        %v816 = vpack.c.b16 %v807, %v806
        %v817 = vpack.c.b16 %v809, %v808
        %826 = vmatprep.subr.bf16.mxu0 0
        %827 = vmatpush1.bf16.msra.mxu0 %v810
        %828 = vmatprep.subr.bf16.mxu0 0
        %829 = vmatpush1.bf16.msra.mxu0 %v811
        %830 = vmatprep.subr.bf16.mxu0 0
        %831 = vmatpush1.bf16.msra.mxu0 %v812
        %832 = vmatprep.subr.bf16.mxu0 0
        %833 = vmatpush1.bf16.msra.mxu0 %v813
        %834 = vmatprep.subr.bf16.mxu0 0
        %835 = vmatpush1.bf16.msra.mxu0 %v814
        %836 = vmatprep.subr.bf16.mxu0 0
        %837 = vmatpush1.bf16.msra.mxu0 %v815
        %838 = vmatprep.subr.bf16.mxu0 0
        %839 = vmatpush1.bf16.msra.mxu0 %v816
        %840 = vmatprep.subr.bf16.mxu0 0
        %841 = vmatpush1.bf16.msra.mxu0 %v817
        %842 = vmatprep.subr.bf16.mxu0 0
        %843 = vmatpush1.bf16.msra.mxu0 0
        %844 = vmatprep.subr.bf16.mxu0 0
        %845 = vmatpush1.bf16.msra.mxu0 0
        %846 = vmatprep.subr.bf16.mxu0 0
        %847 = vmatpush1.bf16.msra.mxu0 0
        %848 = vmatprep.subr.bf16.mxu0 0
        %849 = vmatpush1.bf16.msra.mxu0 0
        %850 = vmatprep.subr.bf16.mxu0 0
        %851 = vmatpush1.bf16.msra.mxu0 0
        %852 = vmatprep.subr.bf16.mxu0 0
        %853 = vmatpush1.bf16.msra.mxu0 0
        %854 = vmatprep.subr.bf16.mxu0 0
        %855 = vmatpush1.bf16.msra.mxu0 0
        %856 = vmatprep.subr.bf16.mxu0 0
        %857 = vmatpush1.bf16.msra.mxu0 0
        %858 = vmatprep.mubr.bf16.mxu0 0
        %859 = vmatmul.mubr.bf16.gmra.mrb[0].mxu0 %v761
        %v860 = vpop.f32.mrb[0].mxu0
        %v861 = vadd.f32 0.0, %v860
        %v862 = vpop.f32.mrb[0].mxu0
        %v863 = vpop.f32.mrb[0].mxu0
        %v864 = vadd.f32 0.0, %v863
        %v865 = vpop.f32.mrb[0].mxu0
        %866 = vdwg.mxu0
        %v883 = vunpack.c.l.b16 %v745
        %v884 = vunpack.c.l.b16 %v746
        %v885 = vunpack.c.l.b16 %v747
        %v886 = vunpack.c.l.b16 %v748
        %v887 = vunpack.c.l.b16 %v749
        %v888 = vunpack.c.l.b16 %v750
        %v889 = vunpack.c.l.b16 %v751
        %v890 = vunpack.c.l.b16 %v752
        %v891 = vunpack.c.l.b16 %v753
        %v892 = vunpack.c.l.b16 %v754
        %v893 = vunpack.c.l.b16 %v755
        %v894 = vunpack.c.l.b16 %v756
        %v895 = vunpack.c.l.b16 %v757
        %v896 = vunpack.c.l.b16 %v758
        %v897 = vunpack.c.l.b16 %v759
        %v898 = vunpack.c.l.b16 %v760
        %v899 = vpack.c.b16 %v884, %v883
        %v900 = vpack.c.b16 %v886, %v885
        %v901 = vpack.c.b16 %v888, %v887
        %v902 = vpack.c.b16 %v890, %v889
        %v903 = vpack.c.b16 %v892, %v891
        %v904 = vpack.c.b16 %v894, %v893
        %v905 = vpack.c.b16 %v896, %v895
        %v906 = vpack.c.b16 %v898, %v897
        %915 = vmatprep.subr.bf16.mxu0 0
        %916 = vmatpush1.bf16.msra.mxu0 %v899
        %917 = vmatprep.subr.bf16.mxu0 0
        %918 = vmatpush1.bf16.msra.mxu0 %v900
        %919 = vmatprep.subr.bf16.mxu0 0
        %920 = vmatpush1.bf16.msra.mxu0 %v901
        %921 = vmatprep.subr.bf16.mxu0 0
        %922 = vmatpush1.bf16.msra.mxu0 %v902
        %923 = vmatprep.subr.bf16.mxu0 0
        %924 = vmatpush1.bf16.msra.mxu0 %v903
        %925 = vmatprep.subr.bf16.mxu0 0
        %926 = vmatpush1.bf16.msra.mxu0 %v904
        %927 = vmatprep.subr.bf16.mxu0 0
        %928 = vmatpush1.bf16.msra.mxu0 %v905
        %929 = vmatprep.subr.bf16.mxu0 0
        %930 = vmatpush1.bf16.msra.mxu0 %v906
        %931 = vmatprep.subr.bf16.mxu0 0
        %932 = vmatpush1.bf16.msra.mxu0 0
        %933 = vmatprep.subr.bf16.mxu0 0
        %934 = vmatpush1.bf16.msra.mxu0 0
        %935 = vmatprep.subr.bf16.mxu0 0
        %936 = vmatpush1.bf16.msra.mxu0 0
        %937 = vmatprep.subr.bf16.mxu0 0
        %938 = vmatpush1.bf16.msra.mxu0 0
        %939 = vmatprep.subr.bf16.mxu0 0
        %940 = vmatpush1.bf16.msra.mxu0 0
        %941 = vmatprep.subr.bf16.mxu0 0
        %942 = vmatpush1.bf16.msra.mxu0 0
        %943 = vmatprep.subr.bf16.mxu0 0
        %944 = vmatpush1.bf16.msra.mxu0 0
        %945 = vmatprep.subr.bf16.mxu0 0
        %946 = vmatpush1.bf16.msra.mxu0 0
        %947 = vmatprep.mubr.bf16.mxu0 0
        %948 = vmatmul.mubr.bf16.gmra.mrb[0].mxu0 %v744
        %v949 = vpop.f32.mrb[0].mxu0
        %v950 = vadd.f32 %v861, %v949
        %v951 = vpop.f32.mrb[0].mxu0
        %v952 = vpop.f32.mrb[0].mxu0
        %v953 = vadd.f32 %v864, %v952
        %v954 = vpop.f32.mrb[0].mxu0
        %955 = vdwg.mxu0
        %v956 = vld [vmem:[%s7] sm:$0x1]
        %v958 = vlaneseq
        %v959 = vshrl.u32 %v958, 7
        %v960 = vsub.s32 0, %v959
        %v961 = vrot.slane %v956, %v960
        %v963 = vadd.f32 %v950, %v961
        %v964 = vadd.f32 %v953, %v961
        %v965 = vld [vmem:[%s8] sm:$0xff]
        %v966 = vld [vmem:[%s8 + $0x8] sm:$0xff]
        %v967 = vld [vmem:[%s8 + $0x10] sm:$0xff]
        %v968 = vld [vmem:[%s8 + $0x18] sm:$0xff]
        %v969 = vld [vmem:[%s8 + $0x20] sm:$0xff]
        %v970 = vld [vmem:[%s8 + $0x28] sm:$0xff]
        %v971 = vld [vmem:[%s8 + $0x30] sm:$0xff]
        %v972 = vld [vmem:[%s8 + $0x38] sm:$0xff]
        %v973 = vld [vmem:[%s8 + $0x40] sm:$0xff]
        %v974 = vld [vmem:[%s8 + $0x48] sm:$0xff]
        %v975 = vld [vmem:[%s8 + $0x50] sm:$0xff]
        %v976 = vld [vmem:[%s8 + $0x58] sm:$0xff]
        %v977 = vld [vmem:[%s8 + $0x60] sm:$0xff]
        %v978 = vld [vmem:[%s8 + $0x68] sm:$0xff]
        %v979 = vld [vmem:[%s8 + $0x70] sm:$0xff]
        %v980 = vld [vmem:[%s8 + $0x78] sm:$0xff]
        %v981 = vld [vmem:[%s9] sm:$0x1]
        %v983 = vlaneseq
        %v984 = vshrl.u32 %v983, 7
        %v985 = vsub.s32 0, %v984
        %v986 = vrot.slane %v981, %v985
        %988 = vmatprep.subr.mxu0 0.0
        %989 = vmatpush1.msra.mxu0 %v965
        %990 = vmatprep.subr.mxu0 0.0
        %991 = vmatpush1.msra.mxu0 %v966
        %992 = vmatprep.subr.mxu0 0.0
        %993 = vmatpush1.msra.mxu0 %v967
        %994 = vmatprep.subr.mxu0 0.0
        %995 = vmatpush1.msra.mxu0 %v968
        %996 = vmatprep.subr.mxu0 0.0
        %997 = vmatpush1.msra.mxu0 %v969
        %998 = vmatprep.subr.mxu0 0.0
        %999 = vmatpush1.msra.mxu0 %v970
        %1000 = vmatprep.subr.mxu0 0.0
        %1001 = vmatpush1.msra.mxu0 %v971
        %1002 = vmatprep.subr.mxu0 0.0
        %1003 = vmatpush1.msra.mxu0 %v972
        %1004 = vmatprep.subr.mxu0 0.0
        %1005 = vmatpush1.msra.mxu0 %v973
        %1006 = vmatprep.subr.mxu0 0.0
        %1007 = vmatpush1.msra.mxu0 %v974
        %1008 = vmatprep.subr.mxu0 0.0
        %1009 = vmatpush1.msra.mxu0 %v975
        %1010 = vmatprep.subr.mxu0 0.0
        %1011 = vmatpush1.msra.mxu0 %v976
        %1012 = vmatprep.subr.mxu0 0.0
        %1013 = vmatpush1.msra.mxu0 %v977
        %1014 = vmatprep.subr.mxu0 0.0
        %1015 = vmatpush1.msra.mxu0 %v978
        %1016 = vmatprep.subr.mxu0 0.0
        %1017 = vmatpush1.msra.mxu0 %v979
        %1018 = vmatprep.subr.mxu0 0.0
        %1019 = vmatpush1.msra.mxu0 %v980
        %1020 = vmatprep.subr.mxu0 0.0
        %1021 = vmatpush1.msra.mxu0 0.0
        %1022 = vmatprep.subr.mxu0 0.0
        %1023 = vmatpush1.msra.mxu0 0.0
        %1024 = vmatprep.subr.mxu0 0.0
        %1025 = vmatpush1.msra.mxu0 0.0
        %1026 = vmatprep.subr.mxu0 0.0
        %1027 = vmatpush1.msra.mxu0 0.0
        %1028 = vmatprep.subr.mxu0 0.0
        %1029 = vmatpush1.msra.mxu0 0.0
        %1030 = vmatprep.subr.mxu0 0.0
        %1031 = vmatpush1.msra.mxu0 0.0
        %1032 = vmatprep.subr.mxu0 0.0
        %1033 = vmatpush1.msra.mxu0 0.0
        %1034 = vmatprep.subr.mxu0 0.0
        %1035 = vmatpush1.msra.mxu0 0.0
        %1036 = vmatprep.subr.mxu0 0.0
        %1037 = vmatpush1.msra.mxu0 0.0
        %1038 = vmatprep.subr.mxu0 0.0
        %1039 = vmatpush1.msra.mxu0 0.0
        %1040 = vmatprep.subr.mxu0 0.0
        %1041 = vmatpush1.msra.mxu0 0.0
        %1042 = vmatprep.subr.mxu0 0.0
        %1043 = vmatpush1.msra.mxu0 0.0
        %1044 = vmatprep.subr.mxu0 0.0
        %1045 = vmatpush1.msra.mxu0 0.0
        %1046 = vmatprep.subr.mxu0 0.0
        %1047 = vmatpush1.msra.mxu0 0.0
        %1048 = vmatprep.subr.mxu0 0.0
        %1049 = vmatpush1.msra.mxu0 0.0
        %1050 = vmatprep.subr.mxu0 0.0
        %1051 = vmatpush1.msra.mxu0 0.0
        %1052 = vmatprep.mubr.f32.mxu0 0.0
        %1053 = vmatmul.mubr.f32.gmra.mrb[0].mxu0 %v963
        %v1054 = vpop.f32.mrb[0].mxu0
        %v1055 = vadd.f32 %v986, %v1054
        %v1056 = vpop.f32.mrb[0].mxu0
        %1057 = vmatprep.mubr.f32.mxu0 0.0
        %1058 = vmatmul.mubr.f32.gmra.mrb[0].mxu0 %v964
        %v1059 = vpop.f32.mrb[0].mxu0
        %v1060 = vadd.f32 %v986, %v1059
        %v1061 = vpop.f32.mrb[0].mxu0
        %1062 = vdwg.mxu0
        %1063 = vst [vmem:[%s373] sm:$0xff] %v1055
        %1064 = vst [vmem:[%s373 + $0x8] sm:$0xff] %v1060
      $region68: #{sage_forward.1} parent=59 // pred_fallthru
        _
      %s1065 = smul.u32 2, %s26
      %p1066 = scmp.lt.s32.totalorder %s1065, 1
      %s1067 = scalar_select %p1066, %s1065, 1
      %s1068 = smul.addr %s1067, 8
      %s1069 = scalar_lea.vmem %s10, %s1068
      // Predicated region
      $region69: #{sage_forward.1} parent=59 // pred_check
        %p1070 = pneg %p266
      $region70: #{sage_forward.1} parent=59 // pred_check_branch
        %1072 = sbr.rel (%p1070) target = $region72
      $region71: #{sage_forward.1} parent=59 // pred_region
        %s1073 = smul.u32 2, %s26
      $region72: #{sage_forward.1} parent=59 // pred_fallthru
        _
      // Predicated region
      $region73: #{sage_forward.1} parent=59 // pred_check
        %p1074 = pneg %p266
      $region74: #{sage_forward.1} parent=59 // pred_check_branch
        %1076 = sbr.rel (%p1074) target = $region76
      $region75: #{sage_forward.1} parent=59 // pred_region
        %s1077 = smul.u32 2, %s26
        %p1078 = scmp.lt.s32.totalorder %s1077, 1
        %s1079 = scalar_select %p1078, %s1077, 1
        %s1080 = smul.addr %s1079, 8
        %s1081 = scalar_lea.vmem %s10, %s1080
      $region76: #{sage_forward.1} parent=59 // pred_fallthru
        _
    $region60: #{sage_forward.1} parent=5 // pred_fallthru
      _
    %p1082 = scmp.le.s32.totalorder 2, %s16
    // Predicated region
    $region77: #{sage_forward.1} parent=5 // pred_check
      %p1083 = pneg %p1082
    $region78: #{sage_forward.1} parent=5 // pred_check_branch
      %1085 = sbr.rel (%p1083) target = $region80
    $region79: #{sage_forward.1} parent=5 // pred_region
      %s1086 = ssub.s32 %s16, 2
    $region80: #{sage_forward.1} parent=5 // pred_fallthru
      _
  $region6: #{sage_forward.1} parent=0 // loop_footer
    %s20 = sadd.s32 1, %s16
  $region7: #{sage_forward.1} parent=0 // loop_footer_branch
    %15 = sbr.rel target = $region3
  $region8: #{sage_forward.1} parent=0 // loop_exit
    _

</llo_original>
